<compile_context>
chip_gen: v7x
topology: tpu7x:2x2x1
jax: 0.10.0
libtpu: 0.0.40
codegen_flags: <defaults>
</compile_context>

<pallas_src>
import functools

import numpy as np
import jax
import jax.numpy as jnp
from jax.experimental import pallas as pl
from jax.experimental.pallas import tpu as pltpu


def _round_up(x, m):
    return ((x + m - 1) // m) * m


_EPS = 1e-8
# int32 bit pattern of the f32 denominator threshold: any per-pixel winner
# whose (masked) denom key is <= this is background (matches "denom > eps").
_THRESH_KEY = int(np.array(_EPS, np.float32).view(np.int32))

_HAS_PL_RECIP = hasattr(pl, "reciprocal")


def _approx_recip(x):
    if _HAS_PL_RECIP:
        return pl.reciprocal(x, approx=True)
    return 1.0 / x


def _raster_interp_kernel(flist_ref, fcnt_ref, basis_ref, coef_ref, fattr_ref,
                          out_ref, best_key_ref, acc_ref, *,
                          num_ch, f_tile, n_ptiles, key_mask, out_ch):
    """One (batch, pixel-tile, binned-face-tile) grid step.

    flist_ref: SMEM (B*P*NF,)          per (b,p) face-tile ids, overlapping first
    fcnt_ref:  SMEM (B*P,)             number of overlapping face tiles per (b,p)
    basis_ref: VMEM (8, HW_TILE)       pixel basis rows [px, py, 1, 0, ...]
    coef_ref:  VMEM (1, 1, 4*F_TILE, 8) per-face affine coefs, row groups
                                       [wiz0 | wiz1 | wiz2 | denom] x F_TILE
    fattr_ref: VMEM (1, 3, C, F_TILE)  per-slot, per-channel face attributes
    out_ref:   VMEM (1, OUT_CH, HW_TILE) [features | depth | zero padding]
    best_key_ref: VMEM (1, HW_TILE) i32  running bit-packed (denom, face) key
    acc_ref:   VMEM (C, HW_TILE)       running un-normalized winner attributes
    """
    f_step = pl.program_id(2)

    @pl.when(f_step == 0)
    def _init():
        best_key_ref[...] = jnp.full(best_key_ref.shape, _THRESH_KEY, jnp.int32)
        acc_ref[...] = jnp.zeros(acc_ref.shape, jnp.float32)

    b = pl.program_id(0)
    p = pl.program_id(1)
    cnt = fcnt_ref[b * n_ptiles + p]

    @pl.when(f_step < cnt)          # binned: skip face tiles that miss this pixel tile
    def _compute():
        basis = basis_ref[...]                                  # (8, HW)
        coef = coef_ref[0, 0]                                   # (4F, 8)
        # All edge functions + perspective denominators for every (face, pixel)
        # pair of this tile come out of one low-K MXU matmul; the VPU below
        # only does masking / winner selection.
        wd = jnp.dot(coef, basis, preferred_element_type=jnp.float32)  # (4F, HW)
        wiz0 = wd[0 * f_tile:1 * f_tile]
        wiz1 = wd[1 * f_tile:2 * f_tile]
        wiz2 = wd[2 * f_tile:3 * f_tile]
        den = wd[3 * f_tile:4 * f_tile]

        # Inside test == sign checks (1/area and 1/z already folded into the
        # coefficients; culled / padded faces have all-zero coefs -> den == 0
        # -> rejected by the key threshold).
        inside = jnp.minimum(jnp.minimum(wiz0, wiz1), wiz2) >= 0.0
        mden = jnp.where(inside, den, 0.0)                      # >= 0 when inside

        # Fused depth winner + tie-break: bigger denom == smaller depth; pack
        # the reversed local face index into the low mantissa bits and take a
        # single integer max -> exact first-face-wins one-hot in one pass.
        rev = (f_tile - 1) - jax.lax.broadcasted_iota(jnp.int32, mden.shape, 0)
        key = (pltpu.bitcast(mden, jnp.int32) & jnp.int32(key_mask)) | rev
        tile_key = jnp.max(key, axis=0, keepdims=True)          # (1, HW)
        sel = key == tile_key                                   # exact one-hot

        # Winner attributes via MXU; normalization by 1/denom is deferred to
        # finalize (saves three full-tile multiplies per step).  Keeping three
        # K=F_TILE dots avoids materializing a concatenated (3F, HW) operand.
        bc0 = jnp.where(sel, wiz0, 0.0)
        bc1 = jnp.where(sel, wiz1, 0.0)
        bc2 = jnp.where(sel, wiz2, 0.0)
        num = (jnp.dot(fattr_ref[0, 0], bc0, preferred_element_type=jnp.float32)
               + jnp.dot(fattr_ref[0, 1], bc1, preferred_element_type=jnp.float32)
               + jnp.dot(fattr_ref[0, 2], bc2, preferred_element_type=jnp.float32))

        # Strict '>' keeps earlier face tiles on exact key ties ("earliest
        # face wins", up to the low mantissa bits borrowed for the tie-break).
        take = tile_key > best_key_ref[...]                     # (1, HW)
        best_key_ref[...] = jnp.where(take, tile_key, best_key_ref[...])
        acc_ref[...] = jnp.where(take, num, acc_ref[...])

    @pl.when(f_step == pl.num_programs(2) - 1)
    def _finalize():
        best = best_key_ref[...]                                # (1, HW) int32
        hit = best > _THRESH_KEY
        den = pltpu.bitcast(best & jnp.int32(key_mask), jnp.float32)
        inv = _approx_recip(den)
        inv = inv * (2.0 - den * inv)       # one Newton step -> ~f32 accurate
        feat = jnp.where(hit, acc_ref[...] * inv, 0.0)          # (C, HW)
        depth = jnp.where(hit, inv, -1.0)                       # (1, HW)
        # Lane-dense, 8-channel-padded output block; slice padding off in JAX.
        out_ref[0, :num_ch, :] = feat
        out_ref[0, num_ch:num_ch + 1, :] = depth
        if out_ch > num_ch + 1:
            out_ref[0, num_ch + 1:, :] = jnp.zeros(
                (out_ch - num_ch - 1, depth.shape[-1]), jnp.float32)


def diff_render_forward(verts, faces, vert_attribute, T, K, render_image_size,
                        *, face_tile=256, pix_tile=1024):
    """Pallas port of DiffRender.forward / DiffRendererWrapper.forward
    (feature map + depth, render_texture=False)."""
    H, W = render_image_size
    B = T.shape[0]
    Fn = faces.shape[0]
    C = vert_attribute.shape[-1]
    HW = H * W

    # ---- tile sizes --------------------------------------------------------
    # Faces on sublanes: f_tile=256 matches the 256-wide MXU on v6e/v7x; tiny
    # meshes get a tighter tile.  The <=256 cap keeps the face-index tie-break
    # inside 8 mantissa bits of the depth key.
    f_tile = min(face_tile, 256, _round_up(max(Fn, 1), 8))
    f_pad = _round_up(Fn, f_tile)
    nft = f_pad // f_tile
    key_bits = max(1, (f_tile - 1).bit_length())
    key_mask = ~((1 << key_bits) - 1)

    hw_tile = min(_round_up(HW, 128), pix_tile)
    # v7x megacore: make sure the parallel (batch x pixel-tile) axes have at
    # least two blocks so both TensorCores get work.
    if B * (_round_up(HW, hw_tile) // hw_tile) < 2 and hw_tile >= 256:
        hw_tile = _round_up(hw_tile // 2, 128)
    hw_pad = _round_up(HW, hw_tile)
    n_pt = hw_pad // hw_tile
    out_ch = _round_up(C + 1, 8)

    # ---- camera / per-face affine coefficients (plain JAX, O(B*F), once) ---
    # u_hom = K (R x + t); the OpenCV->PyTorch3D flip (cam_opencv2pytch3d) and
    # PyTorch3D's screen-space convention flip cancel, as in the v2 port.
    # TODO(synk): PyTorch3D's zbuf is NDC-space z; we return camera-space
    # interpolated z (background -1 matches).
    eps = _EPS
    R = T[:, :3, :3]
    t = T[:, :3, 3]
    M = jnp.einsum('bij,bjk->bik', K, R)                              # (B,3,3)
    c = jnp.einsum('bij,bj->bi', K, t)                                # (B,3)
    fverts = verts[faces].astype(jnp.float32)                         # (F,3,3)
    cam = (jnp.einsum('bij,fsj->bfsi', M, fverts)
           + c[:, None, None, :])                                     # (B,F,3,3)
    zc = cam[..., 2]
    z_safe = jnp.where(jnp.abs(zc) > eps, zc, eps)
    iz = 1.0 / z_safe
    xs = cam[..., 0] * iz
    ys = cam[..., 1] * iz

    x0, x1, x2 = xs[..., 0], xs[..., 1], xs[..., 2]
    y0, y1, y2 = ys[..., 0], ys[..., 1], ys[..., 2]
    z0, z1, z2 = zc[..., 0], zc[..., 1], zc[..., 2]
    iz0, iz1, iz2 = iz[..., 0], iz[..., 1], iz[..., 2]

    area = (x1 - x0) * (y2 - y0) - (y1 - y0) * (x2 - x0)
    area_ok = jnp.abs(area) > eps
    valid_face = (z0 > eps) & (z1 > eps) & (z2 > eps) & area_ok
    inv_area = jnp.where(area_ok, 1.0, 0.0) / jnp.where(area_ok, area, 1.0)

    def _edge(g, xa, ya, xb, yb):
        # g * [(xb-xa)*(py-ya) - (yb-ya)*(px-xa)]  ==  A*px + B*py + C
        return (-g * (yb - ya),
                g * (xb - xa),
                g * ((yb - ya) * xa - (xb - xa) * ya))

    g0, g1, g2 = iz0 * inv_area, iz1 * inv_area, iz2 * inv_area
    A0, B0, C0 = _edge(g0, x1, y1, x2, y2)        # e12 -> wiz0
    A1, B1, C1 = _edge(g1, x2, y2, x0, y0)        # e20 -> wiz1
    A2, B2, C2 = _edge(g2, x0, y0, x1, y1)        # e01 -> wiz2
    Ad, Bd, Cd = A0 + A1 + A2, B0 + B1 + B2, C0 + C1 + C2

    coef = jnp.stack([
        jnp.stack([A0, B0, C0], axis=-1),
        jnp.stack([A1, B1, C1], axis=-1),
        jnp.stack([A2, B2, C2], axis=-1),
        jnp.stack([Ad, Bd, Cd], axis=-1)], axis=-2)                   # (B,F,4,3)
    coef = coef * valid_face[..., None, None].astype(jnp.float32)     # cull
    coef = jnp.pad(coef, ((0, 0), (0, f_pad - Fn), (0, 0), (0, 0)))
    coef = jnp.pad(coef, ((0, 0), (0, 0), (0, 0), (0, 5)))            # K: 3 -> 8
    coef = coef.reshape(B, nft, f_tile, 4, 8).transpose(0, 1, 3, 2, 4)
    coef = coef.reshape(B, nft, 4 * f_tile, 8).astype(jnp.float32)

    face_attr = vert_attribute[:, faces]                              # (B,F,3,C)
    fattr = jnp.transpose(face_attr, (0, 2, 3, 1))                    # (B,3,C,F)
    fattr = jnp.pad(fattr, ((0, 0), (0, 0), (0, 0), (0, f_pad - Fn)))
    fattr = fattr.astype(jnp.float32)

    pix = jnp.arange(hw_pad, dtype=jnp.int32)
    px = (pix % W).astype(jnp.float32) + 0.5
    py = (pix // W).astype(jnp.float32) + 0.5
    basis = jnp.zeros((8, hw_pad), jnp.float32)
    basis = basis.at[0].set(px).at[1].set(py).at[2].set(1.0)

    # ---- coarse face binning (scalar prefetch) ------------------------------
    # Per (batch, pixel-tile): face tiles whose screen-space y bbox overlaps
    # the tile's pixel rows, overlapping tiles first.  The grid's face axis
    # still has nft steps, but steps >= count skip all compute in-kernel.
    p_idx = np.arange(n_pt)
    row_lo = ((p_idx * hw_tile) // W).astype(np.float32)
    row_hi = (((p_idx + 1) * hw_tile - 1) // W).astype(np.float32)

    fy_min = jnp.where(valid_face, jnp.min(ys, axis=-1), 1e30)
    fy_max = jnp.where(valid_face, jnp.max(ys, axis=-1), -1e30)
    fy_min = jnp.pad(fy_min, ((0, 0), (0, f_pad - Fn)), constant_values=1e30)
    fy_max = jnp.pad(fy_max, ((0, 0), (0, f_pad - Fn)), constant_values=-1e30)
    ty_min = fy_min.reshape(B, nft, f_tile).min(axis=-1)              # (B,nft)
    ty_max = fy_max.reshape(B, nft, f_tile).max(axis=-1)
    overlap = ((ty_max[:, None, :] >= row_lo[None, :, None] - 0.5) &
               (ty_min[:, None, :] <= row_hi[None, :, None] + 1.5))   # (B,P,nft)
    ft_idx = jnp.arange(nft, dtype=jnp.int32)
    order = jnp.argsort(jnp.where(overlap, ft_idx, ft_idx + nft),
                        axis=-1).astype(jnp.int32)
    counts = overlap.sum(axis=-1).astype(jnp.int32)                   # (B,P)
    # Padded slots point at tile 0 so skipped steps don't churn the DMA.
    flist = jnp.where(ft_idx[None, None, :] < counts[..., None], order, 0)
    flist = flist.reshape(-1).astype(jnp.int32)                       # (B*P*nft,)
    fcnt = counts.reshape(-1)                                         # (B*P,)

    kernel = functools.partial(
        _raster_interp_kernel, num_ch=C, f_tile=f_tile, n_ptiles=n_pt,
        key_mask=key_mask, out_ch=out_ch)

    out = pl.pallas_call(
        kernel,
        out_shape=jax.ShapeDtypeStruct((B, out_ch, hw_pad), jnp.float32),
        grid_spec=pltpu.PrefetchScalarGridSpec(
            num_scalar_prefetch=2,
            grid=(B, n_pt, nft),
            in_specs=[
                pl.BlockSpec((8, hw_tile),
                             lambda b, p, f, fl, fc: (0, p)),
                pl.BlockSpec((1, 1, 4 * f_tile, 8),
                             lambda b, p, f, fl, fc:
                             (b, fl[(b * n_pt + p) * nft + f], 0, 0)),
                pl.BlockSpec((1, 3, C, f_tile),
                             lambda b, p, f, fl, fc:
                             (b, 0, 0, fl[(b * n_pt + p) * nft + f])),
            ],
            out_specs=pl.BlockSpec((1, out_ch, hw_tile),
                                   lambda b, p, f, fl, fc: (b, 0, p)),
            scratch_shapes=[pltpu.VMEM((1, hw_tile), jnp.int32),
                            pltpu.VMEM((C, hw_tile), jnp.float32)],
        ),
        compiler_params=pltpu.CompilerParams(
            dimension_semantics=("parallel", "parallel", "arbitrary"),
            vmem_limit_bytes=32 * 1024 * 1024),
    )(flist, fcnt, basis, coef, fattr)

    out = out[:, :, :HW]
    out_map = out[:, :C, :].reshape(B, C, H, W)
    out_depth = out[:, C:C + 1, :].reshape(B, 1, H, W)
    return out_map, out_depth


class DiffRendererWrapperPallas:
    """Mirrors DiffRendererWrapper (single shared mesh, render_texture=False)."""

    def __init__(self, meshes):
        # meshes: list of (verts, faces) built deterministically in-script
        # (stands in for the .obj/.ply load in DiffRender.__init__).
        self.meshes = meshes
        self.cls2idx = {f"obj{i}": i for i in range(len(meshes))}

    def __call__(self, model_names, vert_attribute, T, K, render_image_size,
                 near=0.1, far=6, render_tex=False):
        # TODO(synk): render_tex=True (SoftPhongShader lighting/blending) and
        # per-batch heterogeneous-mesh dispatch have no clean Pallas equivalent
        # here; all model_names are assumed to map to the same mesh.
        idx = self.cls2idx[model_names[0]]
        verts, faces = self.meshes[idx]
        return diff_render_forward(verts, faces, vert_attribute, T, K,
                                   render_image_size)


if __name__ == "__main__":
    key = jax.random.PRNGKey(0)
    B, C, H, W = 2, 4, 16, 16

    # deterministic cube mesh: 8 verts, 12 triangular faces
    verts = 0.5 * jnp.array(
        [[-1, -1, -1], [1, -1, -1], [1, 1, -1], [-1, 1, -1],
         [-1, -1, 1], [1, -1, 1], [1, 1, 1], [-1, 1, 1]], dtype=jnp.float32)
    faces = jnp.array(
        [[0, 1, 2], [0, 2, 3], [4, 6, 5], [4, 7, 6],
         [0, 4, 5], [0, 5, 1], [3, 2, 6], [3, 6, 7],
         [0, 3, 7], [0, 7, 4], [1, 5, 6], [1, 6, 2]], dtype=jnp.int32)
    N = verts.shape[0]

    vert_attr = jax.random.normal(key, (B, N, C), dtype=jnp.float32)

    def rot_y(a):
        ca, sa = np.cos(a), np.sin(a)
        return np.array([[ca, 0, sa], [0, 1, 0], [-sa, 0, ca]], np.float32)

    Ts = []
    for ang in (0.0, 0.35):
        Tb = np.eye(4, dtype=np.float32)
        Tb[:3, :3] = rot_y(ang)
        Tb[:3, 3] = [0.0, 0.0, 3.0]
        Ts.append(Tb)
    T = jnp.asarray(np.stack(Ts))                                    # (B, 4, 4)
    K = jnp.asarray(np.stack(
        [np.array([[20., 0., 8.], [0., 20., 8.], [0., 0., 1.]], np.float32)] * B))

    renderer = DiffRendererWrapperPallas([(verts, faces)])
    out_map, out_depth = renderer(["obj0", "obj0"], vert_attr, T, K, (H, W))
    jax.block_until_ready((out_map, out_depth))

    assert out_map.shape == (B, C, H, W)
    assert out_depth.shape == (B, 1, H, W)
    assert bool(jnp.isfinite(out_map).all()) and bool(jnp.isfinite(out_depth).all())
    # the cube sits in front of the camera, so some pixels must be hit
    assert bool((out_depth > 0).any())
    print("KERNEL_OK")
</pallas_src>

<mosaic_0001>
module attributes {stable_mosaic.version = 11 : i64} {
  func.func @_raster_interp_kernel(%arg0: i32, %arg1: i32, %arg2: i32, %arg3: memref<2xi32, #tpu.memory_space<smem>>, %arg4: memref<2xi32, #tpu.memory_space<smem>>, %arg5: memref<8x256xf32, #tpu.memory_space<vmem>>, %arg6: memref<1x1x64x8xf32, #tpu.memory_space<vmem>>, %arg7: memref<1x3x4x16xf32, #tpu.memory_space<vmem>>, %arg8: memref<1x8x256xf32, #tpu.memory_space<vmem>>, %arg9: memref<1x256xi32, #tpu.memory_space<vmem>>, %arg10: memref<4x256xf32, #tpu.memory_space<vmem>>) attributes {dimension_semantics = [#tpu.dimension_semantics<parallel>, #tpu.dimension_semantics<parallel>, #tpu.dimension_semantics<arbitrary>], iteration_bounds = array<i64: 2, 1, 1>, scalar_prefetch = 2 : i64, scratch_operands = 2 : i64, tpu.core_type = #tpu.core_type<tc>, window_params = [{transform_indices = @transform_0, window_bounds = array<i64: 8, 256>}, {transform_indices = @transform_1, window_bounds = array<i64: 1, 1, 64, 8>}, {transform_indices = @transform_2, window_bounds = array<i64: 1, 3, 4, 16>}, {transform_indices = @transform_3, window_bounds = array<i64: 1, 8, 256>}]} {
    %c0_i32 = arith.constant 0 : i32
    %0 = arith.cmpi eq, %arg2, %c0_i32 : i32
    %1 = arith.extui %0 : i1 to i32
    %c0_i32_0 = arith.constant 0 : i32
    %2 = arith.cmpi ne, %1, %c0_i32_0 : i32
    scf.if %2 {
      %c841731191_i32 = arith.constant 841731191 : i32
      %13 = vector.broadcast %c841731191_i32 : i32 to vector<1x256xi32>
      %c0 = arith.constant 0 : index
      %c0_4 = arith.constant 0 : index
      %14 = vector.load %arg9[%c0, %c0_4] : memref<1x256xi32, #tpu.memory_space<vmem>>, vector<1x256xi32>
      tpu.vector_store %arg9[%c0, %c0_4], %13 {strides = array<i32>} : memref<1x256xi32, #tpu.memory_space<vmem>>, vector<1x256xi32>,
      %cst = arith.constant 0.000000e+00 : f32
      %15 = vector.broadcast %cst : f32 to vector<4x256xf32>
      %c0_5 = arith.constant 0 : index
      %c0_6 = arith.constant 0 : index
      %16 = vector.load %arg10[%c0_5, %c0_6] : memref<4x256xf32, #tpu.memory_space<vmem>>, vector<4x256xf32>
      tpu.vector_store %arg10[%c0_5, %c0_6], %15 {strides = array<i32>} : memref<4x256xf32, #tpu.memory_space<vmem>>, vector<4x256xf32>,
    } else {
    }
    %c1_i32 = arith.constant 1 : i32
    %3 = arith.muli %arg0, %c1_i32 : i32
    %4 = arith.addi %3, %arg1 : i32
    %5 = arith.index_cast %4 : i32 to index
    %6 = memref.load %arg4[%5] : memref<2xi32, #tpu.memory_space<smem>>
    %7 = arith.cmpi slt, %arg2, %6 : i32
    %8 = arith.extui %7 : i1 to i32
    %c0_i32_1 = arith.constant 0 : i32
    %9 = arith.cmpi ne, %8, %c0_i32_1 : i32
    scf.if %9 {
      %c0 = arith.constant 0 : index
      %c0_4 = arith.constant 0 : index
      %13 = vector.load %arg5[%c0, %c0_4] : memref<8x256xf32, #tpu.memory_space<vmem>>, vector<8x256xf32>
      %c0_5 = arith.constant 0 : index
      %c0_6 = arith.constant 0 : index
      %c0_7 = arith.constant 0 : index
      %c0_8 = arith.constant 0 : index
      %14 = vector.load %arg6[%c0_5, %c0_6, %c0_7, %c0_8] : memref<1x1x64x8xf32, #tpu.memory_space<vmem>>, vector<1x1x64x8xf32>
      %15 = vector.shape_cast %14 : vector<1x1x64x8xf32> to vector<64x8xf32>
      %cst = arith.constant dense<0.000000e+00> : vector<64x256xf32>
      %16 = tpu.matmul %15, %13, %cst {dimension_numbers = #tpu.dot_dimension_numbers<[1], [0], [0], [1], [0, 0, 1, 1], [], []>} : vector<64x8xf32>, vector<8x256xf32>, vector<64x256xf32> -> vector<64x256xf32>
      %17 = vector.extract_strided_slice %16 {offsets = [0, 0], sizes = [16, 256], strides = [1, 1]} : vector<64x256xf32> to vector<16x256xf32>
      %18 = vector.extract_strided_slice %16 {offsets = [16, 0], sizes = [16, 256], strides = [1, 1]} : vector<64x256xf32> to vector<16x256xf32>
      %19 = vector.extract_strided_slice %16 {offsets = [32, 0], sizes = [16, 256], strides = [1, 1]} : vector<64x256xf32> to vector<16x256xf32>
      %20 = vector.extract_strided_slice %16 {offsets = [48, 0], sizes = [16, 256], strides = [1, 1]} : vector<64x256xf32> to vector<16x256xf32>
      %21 = arith.minimumf %17, %18 : vector<16x256xf32>
      %22 = arith.minimumf %21, %19 : vector<16x256xf32>
      %cst_9 = arith.constant 0.000000e+00 : f32
      %23 = vector.broadcast %cst_9 : f32 to vector<16x256xf32>
      %24 = arith.cmpf oge, %22, %23 : vector<16x256xf32>
      %cst_10 = arith.constant 0.000000e+00 : f32
      %25 = vector.broadcast %cst_10 : f32 to vector<16x256xf32>
      %26 = arith.select %24, %20, %25 : vector<16x256xi1>, vector<16x256xf32>
      %27 = tpu.iota {dimensions = array<i32: 0>} : vector<16x256xi32>
      %c15_i32 = arith.constant 15 : i32
      %28 = vector.broadcast %c15_i32 : i32 to vector<16x256xi32>
      %29 = arith.subi %28, %27 : vector<16x256xi32>
      %30 = tpu.bitcast %26 : vector<16x256xf32> -> vector<16x256xi32>
      %c-16_i32 = arith.constant -16 : i32
      %31 = vector.broadcast %c-16_i32 : i32 to vector<16x256xi32>
      %32 = arith.andi %30, %31 : vector<16x256xi32>
      %33 = arith.ori %32, %29 : vector<16x256xi32>
      %cst_11 = arith.constant dense<-2147483648> : vector<256xi32>
      %34 = vector.multi_reduction <maxsi>, %33, %cst_11 [0] : vector<16x256xi32> to vector<256xi32>
      %35 = vector.shape_cast %34 : vector<256xi32> to vector<1x256xi32>
      %36 = vector.broadcast %35 : vector<1x256xi32> to vector<16x256xi32>
      %37 = arith.cmpi eq, %33, %36 : vector<16x256xi32>
      %cst_12 = arith.constant 0.000000e+00 : f32
      %38 = vector.broadcast %cst_12 : f32 to vector<16x256xf32>
      %39 = arith.select %37, %17, %38 : vector<16x256xi1>, vector<16x256xf32>
      %cst_13 = arith.constant 0.000000e+00 : f32
      %40 = vector.broadcast %cst_13 : f32 to vector<16x256xf32>
      %41 = arith.select %37, %18, %40 : vector<16x256xi1>, vector<16x256xf32>
      %cst_14 = arith.constant 0.000000e+00 : f32
      %42 = vector.broadcast %cst_14 : f32 to vector<16x256xf32>
      %43 = arith.select %37, %19, %42 : vector<16x256xi1>, vector<16x256xf32>
      %c0_15 = arith.constant 0 : index
      %c0_16 = arith.constant 0 : index
      %c0_17 = arith.constant 0 : index
      %c0_18 = arith.constant 0 : index
      %44 = vector.load %arg7[%c0_15, %c0_16, %c0_17, %c0_18] : memref<1x3x4x16xf32, #tpu.memory_space<vmem>>, vector<1x1x4x16xf32>
      %45 = vector.shape_cast %44 : vector<1x1x4x16xf32> to vector<4x16xf32>
      %cst_19 = arith.constant dense<0.000000e+00> : vector<4x256xf32>
      %46 = tpu.matmul %45, %39, %cst_19 {dimension_numbers = #tpu.dot_dimension_numbers<[1], [0], [0], [1], [0, 0, 1, 1], [], []>} : vector<4x16xf32>, vector<16x256xf32>, vector<4x256xf32> -> vector<4x256xf32>
      %c0_20 = arith.constant 0 : index
      %c1 = arith.constant 1 : index
      %c0_21 = arith.constant 0 : index
      %c0_22 = arith.constant 0 : index
      %47 = vector.load %arg7[%c0_20, %c1, %c0_21, %c0_22] : memref<1x3x4x16xf32, #tpu.memory_space<vmem>>, vector<1x1x4x16xf32>
      %48 = vector.shape_cast %47 : vector<1x1x4x16xf32> to vector<4x16xf32>
      %cst_23 = arith.constant dense<0.000000e+00> : vector<4x256xf32>
      %49 = tpu.matmul %48, %41, %cst_23 {dimension_numbers = #tpu.dot_dimension_numbers<[1], [0], [0], [1], [0, 0, 1, 1], [], []>} : vector<4x16xf32>, vector<16x256xf32>, vector<4x256xf32> -> vector<4x256xf32>
      %50 = arith.addf %46, %49 : vector<4x256xf32>
      %c0_24 = arith.constant 0 : index
      %c2 = arith.constant 2 : index
      %c0_25 = arith.constant 0 : index
      %c0_26 = arith.constant 0 : index
      %51 = vector.load %arg7[%c0_24, %c2, %c0_25, %c0_26] : memref<1x3x4x16xf32, #tpu.memory_space<vmem>>, vector<1x1x4x16xf32>
      %52 = vector.shape_cast %51 : vector<1x1x4x16xf32> to vector<4x16xf32>
      %cst_27 = arith.constant dense<0.000000e+00> : vector<4x256xf32>
      %53 = tpu.matmul %52, %43, %cst_27 {dimension_numbers = #tpu.dot_dimension_numbers<[1], [0], [0], [1], [0, 0, 1, 1], [], []>} : vector<4x16xf32>, vector<16x256xf32>, vector<4x256xf32> -> vector<4x256xf32>
      %54 = arith.addf %50, %53 : vector<4x256xf32>
      %c0_28 = arith.constant 0 : index
      %c0_29 = arith.constant 0 : index
      %55 = vector.load %arg9[%c0_28, %c0_29] : memref<1x256xi32, #tpu.memory_space<vmem>>, vector<1x256xi32>
      %56 = arith.cmpi sgt, %35, %55 : vector<1x256xi32>
      %c0_30 = arith.constant 0 : index
      %c0_31 = arith.constant 0 : index
      %57 = vector.load %arg9[%c0_30, %c0_31] : memref<1x256xi32, #tpu.memory_space<vmem>>, vector<1x256xi32>
      %58 = arith.select %56, %35, %57 : vector<1x256xi1>, vector<1x256xi32>
      %c0_32 = arith.constant 0 : index
      %c0_33 = arith.constant 0 : index
      %59 = vector.load %arg9[%c0_32, %c0_33] : memref<1x256xi32, #tpu.memory_space<vmem>>, vector<1x256xi32>
      tpu.vector_store %arg9[%c0_32, %c0_33], %58 {strides = array<i32>} : memref<1x256xi32, #tpu.memory_space<vmem>>, vector<1x256xi32>,
      %c0_34 = arith.constant 0 : index
      %c0_35 = arith.constant 0 : index
      %60 = vector.load %arg10[%c0_34, %c0_35] : memref<4x256xf32, #tpu.memory_space<vmem>>, vector<4x256xf32>
      %61 = vector.shape_cast %56 : vector<1x256xi1> to vector<1x256xi1>
      %62 = vector.broadcast %61 : vector<1x256xi1> to vector<4x256xi1>
      %63 = arith.select %62, %54, %60 : vector<4x256xi1>, vector<4x256xf32>
      %c0_36 = arith.constant 0 : index
      %c0_37 = arith.constant 0 : index
      %64 = vector.load %arg10[%c0_36, %c0_37] : memref<4x256xf32, #tpu.memory_space<vmem>>, vector<4x256xf32>
      tpu.vector_store %arg10[%c0_36, %c0_37], %63 {strides = array<i32>} : memref<4x256xf32, #tpu.memory_space<vmem>>, vector<4x256xf32>,
    } else {
    }
    %c0_i32_2 = arith.constant 0 : i32
    %10 = arith.cmpi eq, %arg2, %c0_i32_2 : i32
    %11 = arith.extui %10 : i1 to i32
    %c0_i32_3 = arith.constant 0 : i32
    %12 = arith.cmpi ne, %11, %c0_i32_3 : i32
    scf.if %12 {
      %c0 = arith.constant 0 : index
      %c0_4 = arith.constant 0 : index
      %13 = vector.load %arg9[%c0, %c0_4] : memref<1x256xi32, #tpu.memory_space<vmem>>, vector<1x256xi32>
      %c841731191_i32 = arith.constant 841731191 : i32
      %14 = vector.broadcast %c841731191_i32 : i32 to vector<1x256xi32>
      %15 = arith.cmpi sgt, %13, %14 : vector<1x256xi32>
      %c-16_i32 = arith.constant -16 : i32
      %16 = vector.broadcast %c-16_i32 : i32 to vector<1x256xi32>
      %17 = arith.andi %13, %16 : vector<1x256xi32>
      %18 = tpu.bitcast %17 : vector<1x256xi32> -> vector<1x256xf32>
      %19 = tpu.reciprocal %18 {approx = true} : vector<1x256xf32> -> vector<1x256xf32>
      %20 = arith.mulf %18, %19 : vector<1x256xf32>
      %cst = arith.constant 2.000000e+00 : f32
      %21 = vector.broadcast %cst : f32 to vector<1x256xf32>
      %22 = arith.subf %21, %20 : vector<1x256xf32>
      %23 = arith.mulf %19, %22 : vector<1x256xf32>
      %c0_5 = arith.constant 0 : index
      %c0_6 = arith.constant 0 : index
      %24 = vector.load %arg10[%c0_5, %c0_6] : memref<4x256xf32, #tpu.memory_space<vmem>>, vector<4x256xf32>
      %25 = vector.broadcast %23 : vector<1x256xf32> to vector<4x256xf32>
      %26 = arith.mulf %24, %25 : vector<4x256xf32>
      %cst_7 = arith.constant 0.000000e+00 : f32
      %27 = vector.shape_cast %15 : vector<1x256xi1> to vector<1x256xi1>
      %28 = vector.broadcast %27 : vector<1x256xi1> to vector<4x256xi1>
      %29 = vector.broadcast %cst_7 : f32 to vector<4x256xf32>
      %30 = arith.select %28, %26, %29 : vector<4x256xi1>, vector<4x256xf32>
      %cst_8 = arith.constant -1.000000e+00 : f32
      %31 = vector.broadcast %cst_8 : f32 to vector<1x256xf32>
      %32 = arith.select %15, %23, %31 : vector<1x256xi1>, vector<1x256xf32>
      %c0_9 = arith.constant 0 : index
      %c0_10 = arith.constant 0 : index
      %c0_11 = arith.constant 0 : index
      %33 = vector.load %arg8[%c0_9, %c0_10, %c0_11] : memref<1x8x256xf32, #tpu.memory_space<vmem>>, vector<1x4x256xf32>
      %34 = vector.shape_cast %33 : vector<1x4x256xf32> to vector<4x256xf32>
      %35 = vector.shape_cast %30 : vector<4x256xf32> to vector<1x4x256xf32>
      tpu.vector_store %arg8[%c0_9, %c0_10, %c0_11], %35 {strides = array<i32>} : memref<1x8x256xf32, #tpu.memory_space<vmem>>, vector<1x4x256xf32>,
      %c0_12 = arith.constant 0 : index
      %c4 = arith.constant 4 : index
      %c0_13 = arith.constant 0 : index
      %36 = vector.load %arg8[%c0_12, %c4, %c0_13] : memref<1x8x256xf32, #tpu.memory_space<vmem>>, vector<1x1x256xf32>
      %37 = vector.shape_cast %36 : vector<1x1x256xf32> to vector<1x256xf32>
      %38 = vector.shape_cast %32 : vector<1x256xf32> to vector<1x1x256xf32>
      tpu.vector_store %arg8[%c0_12, %c4, %c0_13], %38 {strides = array<i32>} : memref<1x8x256xf32, #tpu.memory_space<vmem>>, vector<1x1x256xf32>,
      %cst_14 = arith.constant 0.000000e+00 : f32
      %39 = vector.broadcast %cst_14 : f32 to vector<3x256xf32>
      %c0_15 = arith.constant 0 : index
      %c5 = arith.constant 5 : index
      %c0_16 = arith.constant 0 : index
      %40 = vector.load %arg8[%c0_15, %c5, %c0_16] : memref<1x8x256xf32, #tpu.memory_space<vmem>>, vector<1x3x256xf32>
      %41 = vector.shape_cast %40 : vector<1x3x256xf32> to vector<3x256xf32>
      %42 = vector.shape_cast %39 : vector<3x256xf32> to vector<1x3x256xf32>
      tpu.vector_store %arg8[%c0_15, %c5, %c0_16], %42 {strides = array<i32>} : memref<1x8x256xf32, #tpu.memory_space<vmem>>, vector<1x3x256xf32>,
    } else {
    }
    return
  }
  func.func @transform_0(%arg0: i32, %arg1: i32, %arg2: i32, %arg3: memref<2xi32, #tpu.memory_space<smem>>, %arg4: memref<2xi32, #tpu.memory_space<smem>>) -> (i32, i32) {
    %c0_i32 = arith.constant 0 : i32
    %c0_i32_0 = arith.constant 0 : i32
    return %c0_i32, %arg1 : i32, i32
  }
  func.func @transform_1(%arg0: i32, %arg1: i32, %arg2: i32, %arg3: memref<2xi32, #tpu.memory_space<smem>>, %arg4: memref<2xi32, #tpu.memory_space<smem>>) -> (i32, i32, i32, i32) {
    %c1_i32 = arith.constant 1 : i32
    %0 = arith.muli %arg0, %c1_i32 : i32
    %1 = arith.addi %0, %arg1 : i32
    %c1_i32_0 = arith.constant 1 : i32
    %2 = arith.muli %1, %c1_i32_0 : i32
    %3 = arith.addi %2, %arg2 : i32
    %4 = arith.index_cast %3 : i32 to index
    %5 = memref.load %arg3[%4] : memref<2xi32, #tpu.memory_space<smem>>
    %c0_i32 = arith.constant 0 : i32
    %c0_i32_1 = arith.constant 0 : i32
    %c0_i32_2 = arith.constant 0 : i32
    return %arg0, %5, %c0_i32, %c0_i32_1 : i32, i32, i32, i32
  }
  func.func @transform_2(%arg0: i32, %arg1: i32, %arg2: i32, %arg3: memref<2xi32, #tpu.memory_space<smem>>, %arg4: memref<2xi32, #tpu.memory_space<smem>>) -> (i32, i32, i32, i32) {
    %c1_i32 = arith.constant 1 : i32
    %0 = arith.muli %arg0, %c1_i32 : i32
    %1 = arith.addi %0, %arg1 : i32
    %c1_i32_0 = arith.constant 1 : i32
    %2 = arith.muli %1, %c1_i32_0 : i32
    %3 = arith.addi %2, %arg2 : i32
    %4 = arith.index_cast %3 : i32 to index
    %5 = memref.load %arg3[%4] : memref<2xi32, #tpu.memory_space<smem>>
    %c0_i32 = arith.constant 0 : i32
    %c0_i32_1 = arith.constant 0 : i32
    %c0_i32_2 = arith.constant 0 : i32
    return %arg0, %c0_i32, %c0_i32_1, %5 : i32, i32, i32, i32
  }
  func.func @transform_3(%arg0: i32, %arg1: i32, %arg2: i32, %arg3: memref<2xi32, #tpu.memory_space<smem>>, %arg4: memref<2xi32, #tpu.memory_space<smem>>) -> (i32, i32, i32) {
    %c0_i32 = arith.constant 0 : i32
    %c0_i32_0 = arith.constant 0 : i32
    return %arg0, %c0_i32, %arg1 : i32, i32, i32
  }
}

</mosaic_0001>

<llo_original>
// kernel: tpu_custom_call.1
$region0: #{tpu_custom_call.1}
  #allocation0 [shape = 'u32[]', space=smem, size = 0x4, offset = 0x4, fixed_abs, tag = 'smem constant byte address 0x4 - core index']
  #allocation1 [shape = 'u32[144,128]{1,0:T(1,128)}', space=vmem, size = 0x12000, scoped, tag = 'internal scratch']
  #allocation2 [shape = 's32[1,256]{1,0:T(1,128)}', space=vmem, size = 0x400, scoped, tag = 'scratch operand']
  #allocation3 [shape = 'f32[4,256]{1,0:T(4,128)}', space=vmem, size = 0x1000, scoped, tag = 'scratch operand']
  #allocation4 [shape = 's32[1]{0}', space=sflag, size = 0x4, scoped, tag = 'scoped memory for tpu_custom_call.1']
  #allocation5 [shape = 'u8[512]{0}', space=smem, size = 0x200, scoped, tag = 'prefetched SMEM operand 0']
  #allocation6 [shape = 'u8[512]{0}', space=smem, size = 0x200, scoped, tag = 'prefetched SMEM operand 1']
  %s0 = inlined_call_operand.vmem [shape: s32[2], index: 0, kind: input, shape index: {}]
  %s1 = inlined_call_operand.vmem [shape: s32[2], index: 1, kind: input, shape index: {}]
  %s2 = inlined_call_operand.vmem [shape: f32[8,256], index: 2, kind: input, shape index: {}]
  %s3 = inlined_call_operand.vmem [shape: f32[2,1,64,8], index: 3, kind: input, shape index: {}]
  %s4 = inlined_call_operand.vmem [shape: f32[2,3,4,16], index: 4, kind: input, shape index: {}]
  %s5 = inlined_call_operand.hbm [shape: f32[2,8,256], index: 5, kind: output, shape index: {}]
  %s6 = sld [smem:[#allocation0]]
  $region57: #{tpu_custom_call.1} parent=0
    _
  %s8 = ssub.s32 1, %s6
  %s9 = scalar_select 0, %s8, %s6
  %s10 = sshll.u32 %s0, 4
  %s11 = int_to_ptr.vmem [resolvable:$true] %s10
  %13 = dma.vmem_to_smem %s11, 16, [#allocation5], [#allocation4]
  %s14 = sshll.u32 %s1, 4
  %s15 = int_to_ptr.vmem [resolvable:$true] %s14
  %17 = dma.vmem_to_smem %s15, 16, [#allocation6], [#allocation4]
  %18 = dma.done [#allocation4], 32
  %19 = sfence
  $region1: #{tpu_custom_call.1} parent=0
    #allocation7 [shape = 'u8[16384]{0}', space=vmem, size = 0x4000, scoped, tag = 'output window, operand 0']
    #allocation8 [shape = 's32[2]{0}', space=sflag, size = 0x8, scoped, tag = 'scoped memory for tpu_custom_call.1']
    %20 = vsyncpa [#allocation8], 0
    %s21 = scalar_lea.sflag [#allocation8], 1
    %22 = vsyncpa %s21, 0
    loop: start=0, step=1, limit=4
    $region2: #{tpu_custom_call.1} parent=1 // loop_pre_header
      _
    $region3: #{tpu_custom_call.1} parent=1 // loop_header
      %s24 = sphi 0, %s28
      %p25 = scmp.ge.s32.totalorder %s24, 4
      %s31 = sphi 0, %s50
      %s32 = sphi 0, %s46
      %s33 = sphi 0, %s42
      %s34 = sphi 0, %s31
      %s35 = sphi 0, %s32
      %s36 = sphi 0, %s33
      %s37 = sphi 0, %s34
      %s38 = sphi 0, %s35
      %s39 = sphi 0, %s36
      %s53 = sphi 0, %s55
      %s56 = sphi 0, %s53
      %s57 = sphi 0, %s56
      %s73 = sphi 0, %s57
      %s87 = sphi 0, %s89
      %s90 = sphi 0, %s87
      %s91 = sphi 0, %s90
      %s107 = sphi 0, %s91
      %s121 = sphi 0, %s123
      %s124 = sphi 0, %s121
      %s125 = sphi 0, %s124
      %s141 = sphi 0, %s125
      %s149 = sphi 0, %s151
      %s152 = sphi 0, %s149
      %s153 = sphi 0, %s152
      %s169 = sphi 0, %s153
    $region4: #{tpu_custom_call.1} parent=1 // loop_header_branch
      %27 = sbr.rel (%p25) target = $region8
    $region5: #{tpu_custom_call.1} parent=1 // loop_body
      %s29 = ssub.s32 %s24, 1
      %s30 = ssub.s32 %s24, 2
      %s40 = sadd.s32 1, %s33
      %p41 = scmp.ge.s32.totalorder %s40, 1
      %s42 = scalar_select %p41, 0, %s40
      %s43 = sadd.s32 1, %s32
      %s44 = scalar_select %p41, %s43, %s32
      %p45 = scmp.ge.s32.totalorder %s44, 1
      %s46 = scalar_select %p45, 0, %s44
      %s47 = sadd.s32 1, %s31
      %s48 = scalar_select %p45, %s47, %s31
      %p49 = scmp.ge.s32.totalorder %s48, 2
      %s50 = scalar_select %p49, 0, %s48
      %s51 = ssub.s32 %s32, %s46
      %p52 = scmp.eq.s32.totalorder %s51, 0
      %s54 = sadd.s32 %s53, 1
      %s55 = scalar_select %p52, %s53, %s54
      %p58 = pneg %p52
      %p59 = scmp.eq.s32.totalorder %s24, 1
      %p60 = por %p58, %p59
      %p61 = scmp.ne.s32.totalorder %s53, %s56
      %p62 = scmp.eq.s32.totalorder %s24, 0
      %p63 = por %p61, %p62
      %p64 = scmp.ne.s32.totalorder %s53, %s56
      %p65 = scmp.eq.s32.totalorder %s29, 1
      %p66 = por %p64, %p65
      %p67 = scmp.ne.s32.totalorder %s56, %s57
      %p68 = scmp.eq.s32.totalorder %s29, 0
      %p69 = por %p67, %p68
      %p70 = scmp.ne.s32.totalorder %s56, %s57
      %p71 = scmp.eq.s32.totalorder %s30, 1
      %p72 = por %p70, %p71
      %p74 = scmp.ne.s32.totalorder %s57, %s73
      %p75 = scmp.eq.s32.totalorder %s30, 0
      %p76 = por %p74, %p75
      %s77 = sadd.s32 %s31, %s32
      %s78 = sadd.s32 %s77, %s33
      %s79 = sld [smem:[#allocation5 + %s78]]
      %s80 = sadd.s32 %s50, %s46
      %s81 = sadd.s32 %s80, %s42
      %s82 = sld [smem:[#allocation5 + %s81]]
      %s83 = ssub.s32 %s31, %s50
      %s84 = ssub.s32 %s79, %s82
      %s85 = sor.u32 %s83, %s84
      %p86 = scmp.eq.s32.totalorder %s85, 0
      %s88 = sadd.s32 %s87, 1
      %s89 = scalar_select %p86, %s87, %s88
      %p92 = pneg %p86
      %p93 = scmp.eq.s32.totalorder %s24, 1
      %p94 = por %p92, %p93
      %p95 = scmp.ne.s32.totalorder %s87, %s90
      %p96 = scmp.eq.s32.totalorder %s24, 0
      %p97 = por %p95, %p96
      %p98 = scmp.ne.s32.totalorder %s87, %s90
      %p99 = scmp.eq.s32.totalorder %s29, 1
      %p100 = por %p98, %p99
      %p101 = scmp.ne.s32.totalorder %s90, %s91
      %p102 = scmp.eq.s32.totalorder %s29, 0
      %p103 = por %p101, %p102
      %p104 = scmp.ne.s32.totalorder %s90, %s91
      %p105 = scmp.eq.s32.totalorder %s30, 1
      %p106 = por %p104, %p105
      %p108 = scmp.ne.s32.totalorder %s91, %s107
      %p109 = scmp.eq.s32.totalorder %s30, 0
      %p110 = por %p108, %p109
      %s111 = sadd.s32 %s31, %s32
      %s112 = sadd.s32 %s111, %s33
      %s113 = sld [smem:[#allocation5 + %s112]]
      %s114 = sadd.s32 %s50, %s46
      %s115 = sadd.s32 %s114, %s42
      %s116 = sld [smem:[#allocation5 + %s115]]
      %s117 = ssub.s32 %s31, %s50
      %s118 = ssub.s32 %s113, %s116
      %s119 = sor.u32 %s117, %s118
      %p120 = scmp.eq.s32.totalorder %s119, 0
      %s122 = sadd.s32 %s121, 1
      %s123 = scalar_select %p120, %s121, %s122
      %p126 = pneg %p120
      %p127 = scmp.eq.s32.totalorder %s24, 1
      %p128 = por %p126, %p127
      %p129 = scmp.ne.s32.totalorder %s121, %s124
      %p130 = scmp.eq.s32.totalorder %s24, 0
      %p131 = por %p129, %p130
      %p132 = scmp.ne.s32.totalorder %s121, %s124
      %p133 = scmp.eq.s32.totalorder %s29, 1
      %p134 = por %p132, %p133
      %p135 = scmp.ne.s32.totalorder %s124, %s125
      %p136 = scmp.eq.s32.totalorder %s29, 0
      %p137 = por %p135, %p136
      %p138 = scmp.ne.s32.totalorder %s124, %s125
      %p139 = scmp.eq.s32.totalorder %s30, 1
      %p140 = por %p138, %p139
      %p142 = scmp.ne.s32.totalorder %s125, %s141
      %p143 = scmp.eq.s32.totalorder %s30, 0
      %p144 = por %p142, %p143
      %s145 = ssub.s32 %s31, %s50
      %s146 = ssub.s32 %s32, %s46
      %s147 = sor.u32 %s145, %s146
      %p148 = scmp.eq.s32.totalorder %s147, 0
      %s150 = sadd.s32 %s149, 1
      %s151 = scalar_select %p148, %s149, %s150
      %p154 = pneg %p148
      %p155 = scmp.eq.s32.totalorder %s24, 1
      %p156 = por %p154, %p155
      %p157 = scmp.ne.s32.totalorder %s149, %s152
      %p158 = scmp.eq.s32.totalorder %s24, 0
      %p159 = por %p157, %p158
      %p160 = scmp.ne.s32.totalorder %s149, %s152
      %p161 = scmp.eq.s32.totalorder %s29, 1
      %p162 = por %p160, %p161
      %p163 = scmp.ne.s32.totalorder %s152, %s153
      %p164 = scmp.eq.s32.totalorder %s29, 0
      %p165 = por %p163, %p164
      %p166 = scmp.ne.s32.totalorder %s152, %s153
      %p167 = scmp.eq.s32.totalorder %s30, 1
      %p168 = por %p166, %p167
      %p170 = scmp.ne.s32.totalorder %s153, %s169
      %p171 = scmp.eq.s32.totalorder %s30, 0
      %p172 = por %p170, %p171
      %p173 = scmp.le.s32.totalorder 1, %s24
      %p174 = scmp.lt.s32.totalorder %s24, 3
      %p175 = pnand %p173, %p174
      %p176 = pneg %p175
      // Predicated region
      $region9: #{tpu_custom_call.1} parent=5 // pred_check
        _
      $region10: #{tpu_custom_call.1} parent=5 // pred_check_branch
        %178 = sbr.rel (%p175) target = $region12
      $region11: #{tpu_custom_call.1} parent=5 // pred_region
        %s179 = ssub.s32 %s24, 1
        // Predicated region
        $region13: #{tpu_custom_call.1} parent=11 // pred_check
          %p180 = pneg %p69
        $region14: #{tpu_custom_call.1} parent=11 // pred_check_branch
          %182 = sbr.rel (%p180) target = $region16
        $region15: #{tpu_custom_call.1} parent=11 // pred_region
          %s183 = smul.u32 2, %s35
          %p184 = scmp.lt.s32.totalorder %s183, 1
          %s185 = scalar_select %p184, %s183, 1
          %s186 = smul.addr %s185, 8
          %s187 = scalar_lea.vmem %s2, %s186
          %s188 = smul.u32 2, %s35
        $region16: #{tpu_custom_call.1} parent=11 // pred_fallthru
          _
      $region12: #{tpu_custom_call.1} parent=5 // pred_fallthru
        _
      %p189 = scmp.lt.s32.totalorder %s24, 2
      // Predicated region
      $region17: #{tpu_custom_call.1} parent=5 // pred_check
        %p190 = pneg %p189
      $region18: #{tpu_custom_call.1} parent=5 // pred_check_branch
        %192 = sbr.rel (%p190) target = $region20
      $region19: #{tpu_custom_call.1} parent=5 // pred_region
        // Predicated region
        $region21: #{tpu_custom_call.1} parent=19 // pred_check
          %p193 = pneg %p97
        $region22: #{tpu_custom_call.1} parent=19 // pred_check_branch
          %195 = sbr.rel (%p193) target = $region24
        $region23: #{tpu_custom_call.1} parent=19 // pred_region
          %s196 = sadd.s32 %s31, %s32
          %s197 = sadd.s32 %s196, %s33
          %s198 = sld [smem:[#allocation5 + %s197]]
          %p199 = scmp.lt.s32.totalorder %s31, 1
          %s200 = scalar_select %p199, %s31, 1
          %p201 = scmp.lt.s32.totalorder %s198, 0
          %s202 = scalar_select %p201, %s198, 0
          %s203 = smul.addr %s202, 8
          %s204 = smul.addr %s200, 8
          %s205 = sadd.s32 %s203, %s204
          %s206 = smul.addr %s205, 8
          %s207 = scalar_lea.vmem %s3, %s206
          %s208 = sadd.s32 %s31, %s32
          %s209 = sadd.s32 %s208, %s33
          %s210 = sld [smem:[#allocation5 + %s209]]
        $region24: #{tpu_custom_call.1} parent=19 // pred_fallthru
          _
        // Predicated region
        $region25: #{tpu_custom_call.1} parent=19 // pred_check
          %p211 = pneg %p131
        $region26: #{tpu_custom_call.1} parent=19 // pred_check_branch
          %213 = sbr.rel (%p211) target = $region28
        $region27: #{tpu_custom_call.1} parent=19 // pred_region
          %s214 = sadd.s32 %s31, %s32
          %s215 = sadd.s32 %s214, %s33
          %s216 = sld [smem:[#allocation5 + %s215]]
          %p217 = scmp.lt.s32.totalorder %s31, 1
          %s218 = scalar_select %p217, %s31, 1
          %p219 = scmp.lt.s32.totalorder %s216, 0
          %s220 = scalar_select %p219, %s216, 0
          %s221 = smul.addr %s218, 3
          %s222 = sadd.s32 %s220, %s221
          %s223 = smul.addr %s222, 4
          %s224 = scalar_lea.vmem %s4, %s223
          %s225 = sadd.s32 %s31, %s32
          %s226 = sadd.s32 %s225, %s33
          %s227 = sld [smem:[#allocation5 + %s226]]
        $region28: #{tpu_custom_call.1} parent=19 // pred_fallthru
          _
      $region20: #{tpu_custom_call.1} parent=5 // pred_fallthru
        _
      %p228 = scmp.le.s32.totalorder 1, %s24
      %p229 = scmp.lt.s32.totalorder %s24, 3
      %p230 = pnand %p228, %p229
      %p231 = pneg %p230
      // Predicated region
      $region29: #{tpu_custom_call.1} parent=5 // pred_check
        _
      $region30: #{tpu_custom_call.1} parent=5 // pred_check_branch
        %233 = sbr.rel (%p230) target = $region32
      $region31: #{tpu_custom_call.1} parent=5 // pred_region
        %s234 = ssub.s32 %s24, 1
        %s235 = smul.u32 2, %s35
        %p236 = scmp.lt.s32.totalorder %s235, 1
        %s237 = scalar_select %p236, %s235, 1
        %s238 = smul.addr %s237, 8
        %s239 = scalar_lea.vmem %s2, %s238
        %p240 = pneg %p69
        %p241 = pneg %p66
        %s242 = sadd.s32 %s34, %s35
        %s243 = sadd.s32 %s242, %s36
        %s244 = sld [smem:[#allocation5 + %s243]]
        %p245 = scmp.lt.s32.totalorder %s34, 1
        %s246 = scalar_select %p245, %s34, 1
        %p247 = scmp.lt.s32.totalorder %s244, 0
        %s248 = scalar_select %p247, %s244, 0
        %s249 = smul.addr %s248, 8
        %s250 = smul.addr %s246, 8
        %s251 = sadd.s32 %s249, %s250
        %s252 = smul.addr %s251, 8
        %s253 = scalar_lea.vmem %s3, %s252
        %p254 = pneg %p103
        %p255 = pneg %p100
        %s256 = sadd.s32 %s34, %s35
        %s257 = sadd.s32 %s256, %s36
        %s258 = sld [smem:[#allocation5 + %s257]]
        %p259 = scmp.lt.s32.totalorder %s34, 1
        %s260 = scalar_select %p259, %s34, 1
        %p261 = scmp.lt.s32.totalorder %s258, 0
        %s262 = scalar_select %p261, %s258, 0
        %s263 = smul.addr %s260, 3
        %s264 = sadd.s32 %s262, %s263
        %s265 = smul.addr %s264, 4
        %s266 = scalar_lea.vmem %s4, %s265
        %p267 = pneg %p137
        %p268 = pneg %p134
        %p269 = pneg %p165
        %p270 = pneg %p162
        %s271 = sand.u32 %s152, 1
        %s272 = scalar_lea.sflag [#allocation8], %s271
        %s273 = sand.u32 %s152, 1
        %s274 = smul.addr %s273, 16
        %s275 = scalar_lea.vmem [#allocation7], %s274
        %s276 = smul.u32 2, %s35
        %p277 = scmp.lt.s32.totalorder %s276, 1
        %s278 = scalar_select %p277, %s276, 1
        %s279 = smul.addr %s278, 8
        %s280 = scalar_lea.vmem %s2, %s279
        %s281 = smul.u32 2, %s35
        %s282 = sadd.s32 %s34, %s35
        %s283 = sadd.s32 %s282, %s36
        %s284 = sld [smem:[#allocation5 + %s283]]
        %p285 = scmp.lt.s32.totalorder %s34, 1
        %s286 = scalar_select %p285, %s34, 1
        %p287 = scmp.lt.s32.totalorder %s284, 0
        %s288 = scalar_select %p287, %s284, 0
        %s289 = smul.addr %s288, 8
        %s290 = smul.addr %s286, 8
        %s291 = sadd.s32 %s289, %s290
        %s292 = smul.addr %s291, 8
        %s293 = scalar_lea.vmem %s3, %s292
        %s294 = sadd.s32 %s34, %s35
        %s295 = sadd.s32 %s294, %s36
        %s296 = sld [smem:[#allocation5 + %s295]]
        %s297 = sadd.s32 %s34, %s35
        %s298 = sadd.s32 %s297, %s36
        %s299 = sld [smem:[#allocation5 + %s298]]
        %p300 = scmp.lt.s32.totalorder %s34, 1
        %s301 = scalar_select %p300, %s34, 1
        %p302 = scmp.lt.s32.totalorder %s299, 0
        %s303 = scalar_select %p302, %s299, 0
        %s304 = smul.addr %s301, 3
        %s305 = sadd.s32 %s303, %s304
        %s306 = smul.addr %s305, 4
        %s307 = scalar_lea.vmem %s4, %s306
        %s308 = sadd.s32 %s34, %s35
        %s309 = sadd.s32 %s308, %s36
        %s310 = sld [smem:[#allocation5 + %s309]]
        %s311 = smul.u32 2, %s35
        %p312 = scmp.eq.s32.totalorder %s36, 0
        // Predicated region
        $region33: #{tpu_custom_call.1} parent=31 // pred_check
          %p313 = pneg %p312
        $region34: #{tpu_custom_call.1} parent=31 // pred_check_branch
          %315 = sbr.rel (%p313) target = $region36
        $region35: #{tpu_custom_call.1} parent=31 // pred_region
          %v316 = vlaneseq
          %vm317 = vcmp.ge.s32.totalorder %v316, 0
          %vm318 = vcmp.lt.s32.totalorder %v316, 256
          %vm319 = vmand %vm317, %vm318
          %320 = vst.msk [vmem:[#allocation2] sm:$0x3] %vm319, 841731191
          %321 = vst [vmem:[#allocation3] sm:$0xff] 0.0
        $region36: #{tpu_custom_call.1} parent=31 // pred_fallthru
          _
        %s322 = sadd.s32 %s34, %s35
        %s323 = sld [smem:[#allocation6 + %s322]]
        %p324 = scmp.lt.s32.totalorder %s36, %s323
        // Predicated region
        $region37: #{tpu_custom_call.1} parent=31 // pred_check
          %p325 = pneg %p324
        $region38: #{tpu_custom_call.1} parent=31 // pred_check_branch
          %327 = sbr.rel (%p325) target = $region40
        $region39: #{tpu_custom_call.1} parent=31 // pred_region
          %v328 = vld [vmem:[%s280] sm:$0xff]
          %v329 = vld [vmem:[%s280 + $0x8] sm:$0xff]
          %v330 = vld [vmem:[%s293] sm:$0xff]
          %v331 = vld [vmem:[%s293 + $0x8] sm:$0xff]
          %v332 = vld [vmem:[%s293 + $0x10] sm:$0xff]
          %v333 = vld [vmem:[%s293 + $0x18] sm:$0xff]
          %v334 = vld [vmem:[%s293 + $0x20] sm:$0xff]
          %v335 = vld [vmem:[%s293 + $0x28] sm:$0xff]
          %v336 = vld [vmem:[%s293 + $0x30] sm:$0xff]
          %v337 = vld [vmem:[%s293 + $0x38] sm:$0xff]
          %vm338 = vcmask 64512
          %v340 = vsel %vm338, %v330, 0
          %v343 = vsel %vm338, %v331, 0
          %v346 = vsel %vm338, %v332, 0
          %v349 = vsel %vm338, %v333, 0
          %v352 = vsel %vm338, %v334, 0
          %v355 = vsel %vm338, %v335, 0
          %v358 = vsel %vm338, %v336, 0
          %v361 = vsel %vm338, %v337, 0
          %363 = vmatprep.subr.mxu0 %v329
          %364 = vmatpush1.msra.mxu0 %v328
          %365 = vmatprep.subr.mxu0 0.0
          %366 = vmatpush1.msra.mxu0 0.0
          %367 = vmatprep.subr.mxu0 0.0
          %368 = vmatpush1.msra.mxu0 0.0
          %369 = vmatprep.subr.mxu0 0.0
          %370 = vmatpush1.msra.mxu0 0.0
          %371 = vmatprep.subr.mxu0 0.0
          %372 = vmatpush1.msra.mxu0 0.0
          %373 = vmatprep.subr.mxu0 0.0
          %374 = vmatpush1.msra.mxu0 0.0
          %375 = vmatprep.subr.mxu0 0.0
          %376 = vmatpush1.msra.mxu0 0.0
          %377 = vmatprep.subr.mxu0 0.0
          %378 = vmatpush1.msra.mxu0 0.0
          %379 = vmatprep.subr.mxu0 0.0
          %380 = vmatpush1.msra.mxu0 0.0
          %381 = vmatprep.subr.mxu0 0.0
          %382 = vmatpush1.msra.mxu0 0.0
          %383 = vmatprep.subr.mxu0 0.0
          %384 = vmatpush1.msra.mxu0 0.0
          %385 = vmatprep.subr.mxu0 0.0
          %386 = vmatpush1.msra.mxu0 0.0
          %387 = vmatprep.subr.mxu0 0.0
          %388 = vmatpush1.msra.mxu0 0.0
          %389 = vmatprep.subr.mxu0 0.0
          %390 = vmatpush1.msra.mxu0 0.0
          %391 = vmatprep.subr.mxu0 0.0
          %392 = vmatpush1.msra.mxu0 0.0
          %393 = vmatprep.subr.mxu0 0.0
          %394 = vmatpush1.msra.mxu0 0.0
          %395 = vmatprep.subr.mxu0 0.0
          %396 = vmatpush1.msra.mxu0 0.0
          %397 = vmatprep.subr.mxu0 0.0
          %398 = vmatpush1.msra.mxu0 0.0
          %399 = vmatprep.subr.mxu0 0.0
          %400 = vmatpush1.msra.mxu0 0.0
          %401 = vmatprep.subr.mxu0 0.0
          %402 = vmatpush1.msra.mxu0 0.0
          %403 = vmatprep.subr.mxu0 0.0
          %404 = vmatpush1.msra.mxu0 0.0
          %405 = vmatprep.subr.mxu0 0.0
          %406 = vmatpush1.msra.mxu0 0.0
          %407 = vmatprep.subr.mxu0 0.0
          %408 = vmatpush1.msra.mxu0 0.0
          %409 = vmatprep.subr.mxu0 0.0
          %410 = vmatpush1.msra.mxu0 0.0
          %411 = vmatprep.subr.mxu0 0.0
          %412 = vmatpush1.msra.mxu0 0.0
          %413 = vmatprep.subr.mxu0 0.0
          %414 = vmatpush1.msra.mxu0 0.0
          %415 = vmatprep.subr.mxu0 0.0
          %416 = vmatpush1.msra.mxu0 0.0
          %417 = vmatprep.subr.mxu0 0.0
          %418 = vmatpush1.msra.mxu0 0.0
          %419 = vmatprep.subr.mxu0 0.0
          %420 = vmatpush1.msra.mxu0 0.0
          %421 = vmatprep.subr.mxu0 0.0
          %422 = vmatpush1.msra.mxu0 0.0
          %423 = vmatprep.subr.mxu0 0.0
          %424 = vmatpush1.msra.mxu0 0.0
          %425 = vmatprep.subr.mxu0 0.0
          %426 = vmatpush1.msra.mxu0 0.0
          %427 = vmatprep.mubr.f32.mxu0 0.0
          %428 = vmatmul.mubr.f32.gmra.mrb[0].mxu0 %v340
          %v429 = vpop.f32.mrb[0].mxu0
          %v430 = vadd.f32 0.0, %v429
          %v431 = vpop.f32.mrb[0].mxu0
          %v432 = vadd.f32 0.0, %v431
          %433 = vmatprep.mubr.f32.mxu0 0.0
          %434 = vmatmul.mubr.f32.gmra.mrb[0].mxu0 %v343
          %v435 = vpop.f32.mrb[0].mxu0
          %v436 = vadd.f32 0.0, %v435
          %v437 = vpop.f32.mrb[0].mxu0
          %v438 = vadd.f32 0.0, %v437
          %439 = vmatprep.mubr.f32.mxu0 0.0
          %440 = vmatmul.mubr.f32.gmra.mrb[0].mxu0 %v346
          %v441 = vpop.f32.mrb[0].mxu0
          %v442 = vadd.f32 0.0, %v441
          %v443 = vpop.f32.mrb[0].mxu0
          %v444 = vadd.f32 0.0, %v443
          %445 = vmatprep.mubr.f32.mxu0 0.0
          %446 = vmatmul.mubr.f32.gmra.mrb[0].mxu0 %v349
          %v447 = vpop.f32.mrb[0].mxu0
          %v448 = vadd.f32 0.0, %v447
          %v449 = vpop.f32.mrb[0].mxu0
          %v450 = vadd.f32 0.0, %v449
          %451 = vmatprep.mubr.f32.mxu0 0.0
          %452 = vmatmul.mubr.f32.gmra.mrb[0].mxu0 %v352
          %v453 = vpop.f32.mrb[0].mxu0
          %v454 = vadd.f32 0.0, %v453
          %v455 = vpop.f32.mrb[0].mxu0
          %v456 = vadd.f32 0.0, %v455
          %457 = vmatprep.mubr.f32.mxu0 0.0
          %458 = vmatmul.mubr.f32.gmra.mrb[0].mxu0 %v355
          %v459 = vpop.f32.mrb[0].mxu0
          %v460 = vadd.f32 0.0, %v459
          %v461 = vpop.f32.mrb[0].mxu0
          %v462 = vadd.f32 0.0, %v461
          %463 = vmatprep.mubr.f32.mxu0 0.0
          %464 = vmatmul.mubr.f32.gmra.mrb[0].mxu0 %v358
          %v465 = vpop.f32.mrb[0].mxu0
          %v466 = vadd.f32 0.0, %v465
          %v467 = vpop.f32.mrb[0].mxu0
          %v468 = vadd.f32 0.0, %v467
          %469 = vmatprep.mubr.f32.mxu0 0.0
          %470 = vmatmul.mubr.f32.gmra.mrb[0].mxu0 %v361
          %v471 = vpop.f32.mrb[0].mxu0
          %v472 = vadd.f32 0.0, %v471
          %v473 = vpop.f32.mrb[0].mxu0
          %v474 = vadd.f32 0.0, %v473
          %475 = vdwg.mxu0
          %v476 = vmin.f32 %v430, %v442
          %v477 = vmin.f32 %v432, %v444
          %v478 = vmin.f32 %v436, %v448
          %v479 = vmin.f32 %v438, %v450
          %v480 = vmin.f32 %v476, %v454
          %v481 = vmin.f32 %v477, %v456
          %v482 = vmin.f32 %v478, %v460
          %v483 = vmin.f32 %v479, %v462
          %vm484 = vcmp.ge.f32.partialorder %v480, 0.0
          %vm485 = vcmp.ge.f32.partialorder %v481, 0.0
          %vm486 = vcmp.ge.f32.partialorder %v482, 0.0
          %vm487 = vcmp.ge.f32.partialorder %v483, 0.0
          %v488 = vsel %vm484, %v466, 0.0
          %v489 = vsel %vm485, %v468, 0.0
          %v490 = vsel %vm486, %v472, 0.0
          %v491 = vsel %vm487, %v474, 0.0
          %v492 = vlaneseq
          %v493 = vshrl.u32 %v492, 7
          %v494 = vadd.s32 %v493, 8
          %v495 = vsub.s32 15, %v493
          %v496 = vsub.s32 15, %v494
          %v501 = vand.u32 %v488, 4294967280
          %v502 = vand.u32 %v489, 4294967280
          %v503 = vand.u32 %v490, 4294967280
          %v504 = vand.u32 %v491, 4294967280
          %v505 = vor.u32 %v501, %v495
          %v506 = vor.u32 %v502, %v495
          %v507 = vor.u32 %v503, %v496
          %v508 = vor.u32 %v504, %v496
          %vm509 = vcmp.gt.s32.totalorder %v505, %v507
          %v510 = vsel %vm509, %v505, %v507
          %v511 = vrot.slane %v510, 4
          %vm512 = vcmp.gt.s32.totalorder %v510, %v511
          %v513 = vsel %vm512, %v510, %v511
          %v514 = vrot.slane %v513, 2
          %vm515 = vcmp.gt.s32.totalorder %v513, %v514
          %v516 = vsel %vm515, %v513, %v514
          %v517 = vrot.slane %v516, 1
          %vm518 = vcmp.gt.s32.totalorder %v516, %v517
          %v519 = vsel %vm518, %v516, %v517
          %vm520 = vcmp.gt.s32.totalorder %v506, %v508
          %v521 = vsel %vm520, %v506, %v508
          %v522 = vrot.slane %v521, 4
          %vm523 = vcmp.gt.s32.totalorder %v521, %v522
          %v524 = vsel %vm523, %v521, %v522
          %v525 = vrot.slane %v524, 2
          %vm526 = vcmp.gt.s32.totalorder %v524, %v525
          %v527 = vsel %vm526, %v524, %v525
          %v528 = vrot.slane %v527, 1
          %vm529 = vcmp.gt.s32.totalorder %v527, %v528
          %v530 = vsel %vm529, %v527, %v528
          %vm531 = vcmp.eq.s32.totalorder %v505, %v519
          %vm532 = vcmp.eq.s32.totalorder %v506, %v530
          %vm533 = vcmp.eq.s32.totalorder %v507, %v519
          %vm534 = vcmp.eq.s32.totalorder %v508, %v530
          %v535 = vsel %vm531, %v430, 0.0
          %v536 = vsel %vm532, %v432, 0.0
          %v537 = vsel %vm533, %v436, 0.0
          %v538 = vsel %vm534, %v438, 0.0
          %v539 = vsel %vm531, %v442, 0.0
          %v540 = vsel %vm532, %v444, 0.0
          %v541 = vsel %vm533, %v448, 0.0
          %v542 = vsel %vm534, %v450, 0.0
          %v543 = vsel %vm531, %v454, 0.0
          %v544 = vsel %vm532, %v456, 0.0
          %v545 = vsel %vm533, %v460, 0.0
          %v546 = vsel %vm534, %v462, 0.0
          %v547 = vld [vmem:[%s307] sm:$0xf]
          %s548 = scalar_lea.vmem %s307, 4
          %v549 = vld [vmem:[%s548] sm:$0xf]
          %vm550 = vcmask 130048
          %v552 = vsel %vm550, %v549, 0
          %554 = vmatprep.subr.mxu0 %v540
          %555 = vmatpush1.msra.mxu0 %v539
          %556 = vmatprep.subr.mxu0 %v542
          %557 = vmatpush1.msra.mxu0 %v541
          %558 = vmatprep.subr.mxu0 0.0
          %559 = vmatpush1.msra.mxu0 0.0
          %560 = vmatprep.subr.mxu0 0.0
          %561 = vmatpush1.msra.mxu0 0.0
          %562 = vmatprep.subr.mxu0 0.0
          %563 = vmatpush1.msra.mxu0 0.0
          %564 = vmatprep.subr.mxu0 0.0
          %565 = vmatpush1.msra.mxu0 0.0
          %566 = vmatprep.subr.mxu0 0.0
          %567 = vmatpush1.msra.mxu0 0.0
          %568 = vmatprep.subr.mxu0 0.0
          %569 = vmatpush1.msra.mxu0 0.0
          %570 = vmatprep.subr.mxu0 0.0
          %571 = vmatpush1.msra.mxu0 0.0
          %572 = vmatprep.subr.mxu0 0.0
          %573 = vmatpush1.msra.mxu0 0.0
          %574 = vmatprep.subr.mxu0 0.0
          %575 = vmatpush1.msra.mxu0 0.0
          %576 = vmatprep.subr.mxu0 0.0
          %577 = vmatpush1.msra.mxu0 0.0
          %578 = vmatprep.subr.mxu0 0.0
          %579 = vmatpush1.msra.mxu0 0.0
          %580 = vmatprep.subr.mxu0 0.0
          %581 = vmatpush1.msra.mxu0 0.0
          %582 = vmatprep.subr.mxu0 0.0
          %583 = vmatpush1.msra.mxu0 0.0
          %584 = vmatprep.subr.mxu0 0.0
          %585 = vmatpush1.msra.mxu0 0.0
          %586 = vmatprep.subr.mxu0 0.0
          %587 = vmatpush1.msra.mxu0 0.0
          %588 = vmatprep.subr.mxu0 0.0
          %589 = vmatpush1.msra.mxu0 0.0
          %590 = vmatprep.subr.mxu0 0.0
          %591 = vmatpush1.msra.mxu0 0.0
          %592 = vmatprep.subr.mxu0 0.0
          %593 = vmatpush1.msra.mxu0 0.0
          %594 = vmatprep.subr.mxu0 0.0
          %595 = vmatpush1.msra.mxu0 0.0
          %596 = vmatprep.subr.mxu0 0.0
          %597 = vmatpush1.msra.mxu0 0.0
          %598 = vmatprep.subr.mxu0 0.0
          %599 = vmatpush1.msra.mxu0 0.0
          %600 = vmatprep.subr.mxu0 0.0
          %601 = vmatpush1.msra.mxu0 0.0
          %602 = vmatprep.subr.mxu0 0.0
          %603 = vmatpush1.msra.mxu0 0.0
          %604 = vmatprep.subr.mxu0 0.0
          %605 = vmatpush1.msra.mxu0 0.0
          %606 = vmatprep.subr.mxu0 0.0
          %607 = vmatpush1.msra.mxu0 0.0
          %608 = vmatprep.subr.mxu0 0.0
          %609 = vmatpush1.msra.mxu0 0.0
          %610 = vmatprep.subr.mxu0 0.0
          %611 = vmatpush1.msra.mxu0 0.0
          %612 = vmatprep.subr.mxu0 0.0
          %613 = vmatpush1.msra.mxu0 0.0
          %614 = vmatprep.subr.mxu0 0.0
          %615 = vmatpush1.msra.mxu0 0.0
          %616 = vmatprep.subr.mxu0 0.0
          %617 = vmatpush1.msra.mxu0 0.0
          %618 = vmatprep.mubr.f32.mxu0 0.0
          %619 = vmatmul.mubr.f32.gmra.mrb[0].mxu0 %v552
          %v620 = vpop.f32.mrb[0].mxu0
          %v621 = vadd.f32 0.0, %v620
          %v622 = vpop.f32.mrb[0].mxu0
          %v623 = vadd.f32 0.0, %v622
          %624 = vdwg.mxu0
          %v626 = vsel %vm550, %v547, 0
          %628 = vmatprep.subr.mxu0 %v536
          %629 = vmatpush1.msra.mxu0 %v535
          %630 = vmatprep.subr.mxu0 %v538
          %631 = vmatpush1.msra.mxu0 %v537
          %632 = vmatprep.subr.mxu0 0.0
          %633 = vmatpush1.msra.mxu0 0.0
          %634 = vmatprep.subr.mxu0 0.0
          %635 = vmatpush1.msra.mxu0 0.0
          %636 = vmatprep.subr.mxu0 0.0
          %637 = vmatpush1.msra.mxu0 0.0
          %638 = vmatprep.subr.mxu0 0.0
          %639 = vmatpush1.msra.mxu0 0.0
          %640 = vmatprep.subr.mxu0 0.0
          %641 = vmatpush1.msra.mxu0 0.0
          %642 = vmatprep.subr.mxu0 0.0
          %643 = vmatpush1.msra.mxu0 0.0
          %644 = vmatprep.subr.mxu0 0.0
          %645 = vmatpush1.msra.mxu0 0.0
          %646 = vmatprep.subr.mxu0 0.0
          %647 = vmatpush1.msra.mxu0 0.0
          %648 = vmatprep.subr.mxu0 0.0
          %649 = vmatpush1.msra.mxu0 0.0
          %650 = vmatprep.subr.mxu0 0.0
          %651 = vmatpush1.msra.mxu0 0.0
          %652 = vmatprep.subr.mxu0 0.0
          %653 = vmatpush1.msra.mxu0 0.0
          %654 = vmatprep.subr.mxu0 0.0
          %655 = vmatpush1.msra.mxu0 0.0
          %656 = vmatprep.subr.mxu0 0.0
          %657 = vmatpush1.msra.mxu0 0.0
          %658 = vmatprep.subr.mxu0 0.0
          %659 = vmatpush1.msra.mxu0 0.0
          %660 = vmatprep.subr.mxu0 0.0
          %661 = vmatpush1.msra.mxu0 0.0
          %662 = vmatprep.subr.mxu0 0.0
          %663 = vmatpush1.msra.mxu0 0.0
          %664 = vmatprep.subr.mxu0 0.0
          %665 = vmatpush1.msra.mxu0 0.0
          %666 = vmatprep.subr.mxu0 0.0
          %667 = vmatpush1.msra.mxu0 0.0
          %668 = vmatprep.subr.mxu0 0.0
          %669 = vmatpush1.msra.mxu0 0.0
          %670 = vmatprep.subr.mxu0 0.0
          %671 = vmatpush1.msra.mxu0 0.0
          %672 = vmatprep.subr.mxu0 0.0
          %673 = vmatpush1.msra.mxu0 0.0
          %674 = vmatprep.subr.mxu0 0.0
          %675 = vmatpush1.msra.mxu0 0.0
          %676 = vmatprep.subr.mxu0 0.0
          %677 = vmatpush1.msra.mxu0 0.0
          %678 = vmatprep.subr.mxu0 0.0
          %679 = vmatpush1.msra.mxu0 0.0
          %680 = vmatprep.subr.mxu0 0.0
          %681 = vmatpush1.msra.mxu0 0.0
          %682 = vmatprep.subr.mxu0 0.0
          %683 = vmatpush1.msra.mxu0 0.0
          %684 = vmatprep.subr.mxu0 0.0
          %685 = vmatpush1.msra.mxu0 0.0
          %686 = vmatprep.subr.mxu0 0.0
          %687 = vmatpush1.msra.mxu0 0.0
          %688 = vmatprep.subr.mxu0 0.0
          %689 = vmatpush1.msra.mxu0 0.0
          %690 = vmatprep.subr.mxu0 0.0
          %691 = vmatpush1.msra.mxu0 0.0
          %692 = vmatprep.mubr.f32.mxu0 0.0
          %693 = vmatmul.mubr.f32.gmra.mrb[0].mxu0 %v626
          %v694 = vpop.f32.mrb[0].mxu0
          %v695 = vadd.f32 %v621, %v694
          %v696 = vpop.f32.mrb[0].mxu0
          %v697 = vadd.f32 %v623, %v696
          %698 = vdwg.mxu0
          %s699 = scalar_lea.vmem %s307, 8
          %v700 = vld [vmem:[%s699] sm:$0xf]
          %v702 = vsel %vm550, %v700, 0
          %704 = vmatprep.subr.mxu0 %v544
          %705 = vmatpush1.msra.mxu0 %v543
          %706 = vmatprep.subr.mxu0 %v546
          %707 = vmatpush1.msra.mxu0 %v545
          %708 = vmatprep.subr.mxu0 0.0
          %709 = vmatpush1.msra.mxu0 0.0
          %710 = vmatprep.subr.mxu0 0.0
          %711 = vmatpush1.msra.mxu0 0.0
          %712 = vmatprep.subr.mxu0 0.0
          %713 = vmatpush1.msra.mxu0 0.0
          %714 = vmatprep.subr.mxu0 0.0
          %715 = vmatpush1.msra.mxu0 0.0
          %716 = vmatprep.subr.mxu0 0.0
          %717 = vmatpush1.msra.mxu0 0.0
          %718 = vmatprep.subr.mxu0 0.0
          %719 = vmatpush1.msra.mxu0 0.0
          %720 = vmatprep.subr.mxu0 0.0
          %721 = vmatpush1.msra.mxu0 0.0
          %722 = vmatprep.subr.mxu0 0.0
          %723 = vmatpush1.msra.mxu0 0.0
          %724 = vmatprep.subr.mxu0 0.0
          %725 = vmatpush1.msra.mxu0 0.0
          %726 = vmatprep.subr.mxu0 0.0
          %727 = vmatpush1.msra.mxu0 0.0
          %728 = vmatprep.subr.mxu0 0.0
          %729 = vmatpush1.msra.mxu0 0.0
          %730 = vmatprep.subr.mxu0 0.0
          %731 = vmatpush1.msra.mxu0 0.0
          %732 = vmatprep.subr.mxu0 0.0
          %733 = vmatpush1.msra.mxu0 0.0
          %734 = vmatprep.subr.mxu0 0.0
          %735 = vmatpush1.msra.mxu0 0.0
          %736 = vmatprep.subr.mxu0 0.0
          %737 = vmatpush1.msra.mxu0 0.0
          %738 = vmatprep.subr.mxu0 0.0
          %739 = vmatpush1.msra.mxu0 0.0
          %740 = vmatprep.subr.mxu0 0.0
          %741 = vmatpush1.msra.mxu0 0.0
          %742 = vmatprep.subr.mxu0 0.0
          %743 = vmatpush1.msra.mxu0 0.0
          %744 = vmatprep.subr.mxu0 0.0
          %745 = vmatpush1.msra.mxu0 0.0
          %746 = vmatprep.subr.mxu0 0.0
          %747 = vmatpush1.msra.mxu0 0.0
          %748 = vmatprep.subr.mxu0 0.0
          %749 = vmatpush1.msra.mxu0 0.0
          %750 = vmatprep.subr.mxu0 0.0
          %751 = vmatpush1.msra.mxu0 0.0
          %752 = vmatprep.subr.mxu0 0.0
          %753 = vmatpush1.msra.mxu0 0.0
          %754 = vmatprep.subr.mxu0 0.0
          %755 = vmatpush1.msra.mxu0 0.0
          %756 = vmatprep.subr.mxu0 0.0
          %757 = vmatpush1.msra.mxu0 0.0
          %758 = vmatprep.subr.mxu0 0.0
          %759 = vmatpush1.msra.mxu0 0.0
          %760 = vmatprep.subr.mxu0 0.0
          %761 = vmatpush1.msra.mxu0 0.0
          %762 = vmatprep.subr.mxu0 0.0
          %763 = vmatpush1.msra.mxu0 0.0
          %764 = vmatprep.subr.mxu0 0.0
          %765 = vmatpush1.msra.mxu0 0.0
          %766 = vmatprep.subr.mxu0 0.0
          %767 = vmatpush1.msra.mxu0 0.0
          %768 = vmatprep.mubr.f32.mxu0 0.0
          %769 = vmatmul.mubr.f32.gmra.mrb[0].mxu0 %v702
          %v770 = vpop.f32.mrb[0].mxu0
          %v771 = vadd.f32 0.0, %v770
          %v772 = vpop.f32.mrb[0].mxu0
          %v773 = vadd.f32 0.0, %v772
          %774 = vdwg.mxu0
          %v775 = vadd.f32 %v695, %v771
          %v776 = vadd.f32 %v697, %v773
          %v777 = vld [vmem:[#allocation2] sm:$0x3]
          %v778 = vlaneseq
          %v779 = vshrl.u32 %v778, 7
          %v780 = vsub.s32 0, %v779
          %v781 = vrot.slane %v777, %v780
          %v782 = vlaneseq
          %v783 = vshrl.u32 %v782, 7
          %v784 = vsub.s32 1, %v783
          %v785 = vrot.slane %v777, %v784
          %vm786 = vcmp.gt.s32.totalorder %v519, %v781
          %vm787 = vcmp.gt.s32.totalorder %v530, %v785
          %v788 = vsel %vm786, %v519, %v781
          %v789 = vsel %vm787, %v530, %v785
          %v790 = vcombine.low %v788, %v789
          %v792 = vunpack.c.l.s4 1966171168
          %v793 = vunpack.c.0.s8 %v792
          %v794 = vlaneseq
          %v795 = vshrl.u32 %v794, 7
          %v796 = vsub.s32 %v793, %v795
          %v797 = vrot.slane %v790, %v796
          %v799 = vunpack.c.l.s4 1966171168
          %v800 = vunpack.c.0.s8 %v799
          %v801 = vlaneseq
          %v802 = vshrl.u32 %v801, 7
          %v803 = vsub.s32 %v800, %v802
          %v804 = vrot.slane %v797, %v803
          %v805 = vlaneseq
          %vm806 = vcmp.ge.s32.totalorder %v805, 0
          %vm807 = vcmp.lt.s32.totalorder %v805, 256
          %vm808 = vmand %vm806, %vm807
          %809 = vst.msk [vmem:[#allocation2] sm:$0x3] %vm808, %v804
          %v810 = vld [vmem:[#allocation3] sm:$0xff]
          %v811 = vsel %vm786, 1, 0
          %v812 = vsel %vm787, 1, 0
          %v813 = vlaneseq
          %v814 = vshrl.u32 %v813, 7
          %v815 = vsub.s32 0, %v814
          %v816 = vrot.slane %v811, %v815
          %v817 = vlaneseq
          %v818 = vshrl.u32 %v817, 7
          %v819 = vsub.s32 0, %v818
          %v820 = vrot.slane %v812, %v819
          %vm821 = vcmp.eq.s32.totalorder %v816, 1
          %vm822 = vcmp.eq.s32.totalorder %v820, 1
          %v824 = vcombine.high %v810, %v810
          %v826 = vsel %vm821, %v775, %v810
          %v827 = vsel %vm822, %v776, %v824
          %v830 = vcombine.low %v826, %v827
          %832 = vst [vmem:[#allocation3] sm:$0xff] %v830
        $region40: #{tpu_custom_call.1} parent=31 // pred_fallthru
          _
        // Predicated region
        $region41: #{tpu_custom_call.1} parent=31 // pred_check
          %p833 = pneg %p312
        $region42: #{tpu_custom_call.1} parent=31 // pred_check_branch
          %835 = sbr.rel (%p833) target = $region44
        $region43: #{tpu_custom_call.1} parent=31 // pred_region
          %v836 = vld [vmem:[#allocation2] sm:$0x3]
          %vm837 = vcmp.gt.s32.totalorder %v836, 841731191
          %v838 = vand.u32 %v836, 4294967280
          %v839 = vlaneseq
          %v840 = vshrl.u32 %v839, 7
          %v841 = vsub.s32 0, %v840
          %v842 = vrot.slane %v838, %v841
          %v843 = vlaneseq
          %v844 = vshrl.u32 %v843, 7
          %v845 = vsub.s32 1, %v844
          %v846 = vrot.slane %v838, %v845
          %v849 = vrcp.pop %v842
          %v850 = vrcp.pop %v846
          %v851 = vmul.f32 %v842, %v849
          %v852 = vmul.f32 %v846, %v850
          %v853 = vsub.f32 2.0, %v851
          %v854 = vsub.f32 2.0, %v852
          %v855 = vmul.f32 %v849, %v853
          %v856 = vmul.f32 %v850, %v854
          %v857 = vld [vmem:[#allocation3] sm:$0xff]
          %v858 = vlaneseq
          %v859 = vshrl.u32 %v858, 7
          %v860 = vsub.s32 0, %v859
          %v861 = vrot.slane %v855, %v860
          %v862 = vlaneseq
          %v863 = vshrl.u32 %v862, 7
          %v864 = vsub.s32 0, %v863
          %v865 = vrot.slane %v856, %v864
          %v868 = vcombine.low %v861, %v865
          %v870 = vmul.f32 %v857, %v868
          %v871 = vsel %vm837, 1, 0
          %v872 = vlaneseq
          %v873 = vshrl.u32 %v872, 7
          %v874 = vsub.s32 0, %v873
          %v875 = vrot.slane %v871, %v874
          %v876 = vlaneseq
          %v877 = vshrl.u32 %v876, 7
          %v878 = vsub.s32 1, %v877
          %v879 = vrot.slane %v871, %v878
          %vm880 = vcmp.eq.s32.totalorder %v875, 1
          %vm881 = vcmp.eq.s32.totalorder %v879, 1
          %v883 = vcombine.high %v870, %v870
          %v885 = vsel %vm880, %v870, 0.0
          %v886 = vsel %vm881, %v883, 0.0
          %v889 = vcombine.low %v855, %v856
          %v891 = vunpack.c.l.s4 1966171168
          %v892 = vunpack.c.0.s8 %v891
          %v893 = vlaneseq
          %v894 = vshrl.u32 %v893, 7
          %v895 = vsub.s32 %v892, %v894
          %v896 = vrot.slane %v889, %v895
          %v898 = vunpack.c.l.s4 1966171168
          %v899 = vunpack.c.0.s8 %v898
          %v900 = vlaneseq
          %v901 = vshrl.u32 %v900, 7
          %v902 = vsub.s32 %v899, %v901
          %v903 = vrot.slane %v896, %v902
          %v905 = vsel %vm837, %v903, -1.0
          %906 = vst [vmem:[%s275] sm:$0xf] %v885
          %907 = vst [vmem:[%s275 + $0x8] sm:$0xf] %v886
          %v908 = vlaneseq
          %vm909 = vcmp.ge.s32.totalorder %v908, 0
          %vm910 = vcmp.lt.s32.totalorder %v908, 256
          %vm911 = vmand %vm909, %vm910
          %s912 = scalar_lea.vmem %s275, 4 [#allocation7]
          %913 = vst.msk [vmem:[%s912] ss:$8 sm:$0x3] %vm911, %v905
          %914 = vst.msk [vmem:[%s912] ss:$8 sm:$0x0] %vm911, %v905
          %915 = vst [vmem:[%s275] sm:$0xe0] 0.0
          %916 = vst [vmem:[%s275 + $0x8] sm:$0xe0] 0.0
        $region44: #{tpu_custom_call.1} parent=31 // pred_fallthru
          _
        %s917 = sand.u32 %s152, 1
        %s918 = scalar_lea.sflag [#allocation8], %s917
        %s919 = sand.u32 %s152, 1
        %s920 = smul.addr %s919, 16
        %s921 = scalar_lea.vmem [#allocation7], %s920
        // Predicated region
        $region45: #{tpu_custom_call.1} parent=31 // pred_check
          %p922 = pneg %p162
        $region46: #{tpu_custom_call.1} parent=31 // pred_check_branch
          %924 = sbr.rel (%p922) target = $region48
        $region47: #{tpu_custom_call.1} parent=31 // pred_region
          %s925 = smul.u32 2, %s35
          %s927 = ssub.s32 256, 256
          %928 = vsyncadd %s918, %s927
          %s929 = smul.addr %s34, 2
          %s930 = sadd.s32 %s925, %s929
          %s931 = smul.addr %s930, 128
          %s932 = scalar_lea.hbm %s5, %s931
          %s934 = sshll.u32 %s921, 4
          %s935 = int_to_ptr.vmem [resolvable:$true] %s934
          %937 = dma.vmem_to_hbm [thread:$0]  %s935, 256, %s932, %s918
        $region48: #{tpu_custom_call.1} parent=31 // pred_fallthru
          _
      $region32: #{tpu_custom_call.1} parent=5 // pred_fallthru
        _
      %p938 = scmp.le.s32.totalorder 2, %s24
      // Predicated region
      $region49: #{tpu_custom_call.1} parent=5 // pred_check
        %p939 = pneg %p938
      $region50: #{tpu_custom_call.1} parent=5 // pred_check_branch
        %941 = sbr.rel (%p939) target = $region52
      $region51: #{tpu_custom_call.1} parent=5 // pred_region
        %s942 = ssub.s32 %s24, 2
        // Predicated region
        $region53: #{tpu_custom_call.1} parent=51 // pred_check
          %p943 = pneg %p168
        $region54: #{tpu_custom_call.1} parent=51 // pred_check_branch
          %945 = sbr.rel (%p943) target = $region56
        $region55: #{tpu_custom_call.1} parent=51 // pred_region
          %s946 = sand.u32 %s153, 1
          %s947 = scalar_lea.sflag [#allocation8], %s946
          %s948 = sand.u32 %s153, 1
          %s949 = smul.addr %s948, 16
          %s950 = scalar_lea.vmem [#allocation7], %s949
          %951 = dma.done %s947, 256
        $region56: #{tpu_custom_call.1} parent=51 // pred_fallthru
          _
      $region52: #{tpu_custom_call.1} parent=5 // pred_fallthru
        _
    $region6: #{tpu_custom_call.1} parent=1 // loop_footer
      %s28 = sadd.s32 1, %s24
    $region7: #{tpu_custom_call.1} parent=1 // loop_footer_branch
      %23 = sbr.rel target = $region3
    $region8: #{tpu_custom_call.1} parent=1 // loop_exit
      _
    %952 = vsyncpa [#allocation8], 1
    %s953 = scalar_lea.sflag [#allocation8], 1
    %954 = vsyncpa %s953, 1

</llo_original>
